<compile_context>
chip_gen: v7x
topology: tpu7x:2x2x1
jax: 0.10.0
libtpu: 0.0.40
codegen_flags: <defaults>
</compile_context>

<pallas_src>
import jax
import jax.numpy as jnp
from jax.experimental import pallas as pl
from jax.experimental.pallas import tpu as pltpu


def _identity_kernel(x_ref, o_ref):
    # Straight tile copy (output aliases input HBM buffer).
    o_ref[...] = x_ref[...]


_SINGLE_BLOCK_BYTES = 4 * 1024 * 1024   # below this: single grid-free launch
_TARGET_BLOCK_BYTES = 2 * 1024 * 1024   # per-block size for the tiled path


def _lane_dense_cols(n: int):
    """Widest multiple of 128 (<= 4096) that exactly divides n, else None."""
    for cols in (4096, 2048, 1024, 512, 256, 128):
        if n % cols == 0:
            return cols
    return None


def identity_pallas(x: jax.Array) -> jax.Array:
    """Identity forward pass as a Pallas TPU kernel (aliased copy)."""
    orig_shape = x.shape
    n = x.size
    if n == 0:
        return x  # nothing to do

    itemsize = jnp.dtype(x.dtype).itemsize
    cols = _lane_dense_cols(n)
    total_bytes = n * itemsize

    if cols is None or total_bytes <= _SINGLE_BLOCK_BYTES:
        # Grid-free path: one block equal to the full (reshaped) array.
        # Full-dim blocks are always legal, so no padding is needed.
        rows, cols2 = (1, n) if cols is None else (n // cols, cols)
        x2d = x.reshape(rows, cols2)
        y2d = pl.pallas_call(
            _identity_kernel,
            out_shape=jax.ShapeDtypeStruct((rows, cols2), x.dtype),
            input_output_aliases={0: 0},
        )(x2d)
        return y2d.reshape(orig_shape)

    # Tiled path for large tensors: lane-dense 2-D view, ~2 MiB blocks.
    rows = n // cols
    x2d = x.reshape(rows, cols)
    tm = max(8, (_TARGET_BLOCK_BYTES // (cols * itemsize)) // 8 * 8)
    tm = min(tm, rows)
    grid = (pl.cdiv(rows, tm),)  # partial boundary block is fine; no padding

    y2d = pl.pallas_call(
        _identity_kernel,
        out_shape=jax.ShapeDtypeStruct((rows, cols), x.dtype),
        grid_spec=pltpu.PrefetchScalarGridSpec(
            num_scalar_prefetch=0,
            grid=grid,
            in_specs=[pl.BlockSpec((tm, cols), lambda i: (i, 0))],
            out_specs=pl.BlockSpec((tm, cols), lambda i: (i, 0)),
        ),
        compiler_params=pltpu.CompilerParams(
            dimension_semantics=("parallel",),
        ),
        input_output_aliases={0: 0},
    )(x2d)
    return y2d.reshape(orig_shape)


if __name__ == "__main__":
    key = jax.random.PRNGKey(0)
    # Small NCHW-like input consistent with a BNN layer input.
    x = jax.random.normal(key, (2, 4, 16, 16), dtype=jnp.float32)

    identity = jax.jit(identity_pallas)
    y = jax.block_until_ready(identity(x))

    assert y.shape == x.shape and y.dtype == x.dtype
    assert bool(jnp.array_equal(y, x))
    print("KERNEL_OK")
</pallas_src>

<mosaic_0001>
module attributes {stable_mosaic.version = 11 : i64} {
  func.func @_identity_kernel(%arg0: memref<1x2048xf32, #tpu.memory_space<vmem>>, %arg1: memref<1x2048xf32, #tpu.memory_space<vmem>>) attributes {dimension_semantics = [], scalar_prefetch = 0 : i64, scratch_operands = 0 : i64, tpu.core_type = #tpu.core_type<tc>} {
    %c0 = arith.constant 0 : index
    %c0_0 = arith.constant 0 : index
    %0 = vector.load %arg0[%c0, %c0_0] : memref<1x2048xf32, #tpu.memory_space<vmem>>, vector<1x2048xf32>
    %c0_1 = arith.constant 0 : index
    %c0_2 = arith.constant 0 : index
    %1 = vector.load %arg1[%c0_1, %c0_2] : memref<1x2048xf32, #tpu.memory_space<vmem>>, vector<1x2048xf32>
    tpu.vector_store %arg1[%c0_1, %c0_2], %0 {strides = array<i32>} : memref<1x2048xf32, #tpu.memory_space<vmem>>, vector<1x2048xf32>,
    return
  }
}

</mosaic_0001>

<llo_original>
// kernel: identity_pallas.1
$region0: #{identity_pallas.1}
  #allocation0 [shape = 'u32[]', space=smem, size = 0x4, offset = 0x4, fixed_abs, tag = 'smem constant byte address 0x4 - core index']
  #allocation1 [shape = 'u32[144,128]{1,0:T(1,128)}', space=vmem, size = 0x12000, scoped, tag = 'internal scratch']
  %s0 = inlined_call_operand.vmem [shape: f32[1,2048], index: 0, kind: input, shape index: {}, may-alias: {0,1}]
  %s1 = inlined_call_operand.vmem [shape: f32[1,2048], index: 1, kind: output, shape index: {}, may-alias: {0,1}]
  %s2 = sld [smem:[#allocation0]]
  $region14: #{identity_pallas.1} parent=0
    _
  %s4 = ssub.s32 1, %s2
  %s5 = scalar_select 0, %s4, %s2
  // Predicated region
  $region2: #{identity_pallas.1} parent=0 // pred_check
    _
  $region3: #{identity_pallas.1} parent=0 // pred_check_branch
    %7 = sbr.rel (0) target = $region5
  $region4: #{identity_pallas.1} parent=0 // pred_region
    _
  $region5: #{identity_pallas.1} parent=0 // pred_fallthru
    _
  %v8 = vld [vmem:[%s0] sm:$0xff]
  %v9 = vld [vmem:[%s0 + $0x8] sm:$0xff]
  %10 = vst [vmem:[%s1] sm:$0xff] %v8
  %11 = vst [vmem:[%s1 + $0x8] sm:$0xff] %v9
  // Predicated region
  $region6: #{identity_pallas.1} parent=0 // pred_check
    _
  $region7: #{identity_pallas.1} parent=0 // pred_check_branch
    %13 = sbr.rel (0) target = $region9
  $region8: #{identity_pallas.1} parent=0 // pred_region
    _
  $region9: #{identity_pallas.1} parent=0 // pred_fallthru
    _
  // Predicated region
  $region10: #{identity_pallas.1} parent=0 // pred_check
    _
  $region11: #{identity_pallas.1} parent=0 // pred_check_branch
    %15 = sbr.rel (0) target = $region13
  $region12: #{identity_pallas.1} parent=0 // pred_region
    _
  $region13: #{identity_pallas.1} parent=0 // pred_fallthru
    _

</llo_original>
